<compile_context>
chip_gen: v5e
topology: v5e:2x2
jax: 0.10.0
libtpu: 0.0.40
codegen_flags: <defaults>
</compile_context>

<pallas_src>
import functools

import jax
import jax.numpy as jnp
import numpy as np
from jax import lax
from jax.experimental import pallas as pl
from jax.experimental.pallas import tpu as pltpu


def _attention_kernel(x_ref, wqkv_ref, wo_ref, o_ref, ctx_ref, *,
                      block_b: int, block_h: int, seq_len: int,
                      embed_dim: int, head_dim: int):
    hb = pl.program_id(1)

    @pl.when(hb == 0)
    def _init():
        o_ref[...] = jnp.zeros_like(o_ref)

    m = block_b * seq_len
    n = block_h * head_dim

    x = x_ref[...].reshape(m, embed_dim)                        # (M, E) bf16

    # Resident fused weights; slice this step's head group on the row axis.
    qkv_row0 = pl.multiple_of(hb * (3 * n), 3 * n)
    w_qkv = wqkv_ref[pl.ds(qkv_row0, 3 * n)]                    # (3n, E) bf16
    out_row0 = pl.multiple_of(hb * n, n)
    w_out = wo_ref[pl.ds(out_row0, n)]                          # (n, E) bf16

    # One fused Q/K/V projection matmul for the whole head group (N = 3n),
    # f32 accumulation; scaling is already folded into the q rows of w_qkv.
    dn = (((1,), (1,)), ((), ()))
    qkv = lax.dot_general(x, w_qkv, dn,
                          preferred_element_type=jnp.float32)   # (M, 3n) f32

    # Per-head attention core (static unroll over the block_h heads of the
    # group). Only one head's (Bb, T, T) scores are live at a time.
    # TODO(synk): tile the key/value axis with an online (flash-style) softmax
    # once seq_len is large (>= ~512) to avoid the quadratic live scores.
    for g in range(block_h):
        base = g * 3 * head_dim
        q = qkv[:, base:base + head_dim]
        k = qkv[:, base + head_dim:base + 2 * head_dim]
        v = qkv[:, base + 2 * head_dim:base + 3 * head_dim]

        qb = q.reshape(block_b, seq_len, head_dim).astype(jnp.bfloat16)
        kb = k.reshape(block_b, seq_len, head_dim).astype(jnp.bfloat16)
        vb = v.reshape(block_b, seq_len, head_dim).astype(jnp.bfloat16)

        s = jnp.einsum('btd,bsd->bts', qb, kb,
                       preferred_element_type=jnp.float32)      # (Bb, T, T)
        s = s - jnp.max(s, axis=-1, keepdims=True)
        p = jnp.exp(s)
        denom = jnp.sum(p, axis=-1, keepdims=True)
        r = pl.reciprocal(denom, approx=True)
        r = r * (2.0 - denom * r)     # one Newton step -> near-f32 softmax
        p = p * r

        ctx = jnp.einsum('bts,bsd->btd', p.astype(jnp.bfloat16), vb,
                         preferred_element_type=jnp.float32)    # (Bb, T, Dh)
        ctx_ref[:, g * head_dim:(g + 1) * head_dim] = (
            ctx.reshape(m, head_dim).astype(jnp.bfloat16))

    # One output-projection matmul for the head group (K = n), accumulated
    # into the resident output block across the head-group grid axis.
    partial = jnp.dot(ctx_ref[...], w_out,
                      preferred_element_type=jnp.float32)       # (M, E)
    o_ref[...] += partial.reshape(block_b, seq_len, embed_dim)


def _pick_block_b(batch: int, seq_len: int, target_rows: int = 256) -> int:
    """Largest divisor of `batch` whose folded row count block_b*T stays near
    `target_rows` (256 matches the v6e/v7x MXU depth), while keeping >= 2
    batch tiles when possible so the "parallel" axis can shard across v7x's
    two TensorCores."""
    best = 1
    for d in range(1, batch + 1):
        if batch % d:
            continue
        rows_ok = d * seq_len <= max(target_rows, seq_len)
        tiles_ok = (batch // d) >= 2 or batch == 1
        if rows_ok and tiles_ok:
            best = d
    return best


def _pick_block_h(num_heads: int, head_dim: int, target_n: int = 256) -> int:
    """Smallest divisor of `num_heads` whose group width block_h*Dh reaches
    `target_n` (MXU N-occupancy); all heads for small models."""
    for d in range(1, num_heads + 1):
        if num_heads % d == 0 and d * head_dim >= target_n:
            return d
    return num_heads


def _vmem_bytes(block_b, seq_len, embed_dim, block_h, head_dim):
    """Rough per-core VMEM budget for the chosen tiling."""
    m = block_b * seq_len
    n = block_h * head_dim
    total = 0
    total += 2 * m * embed_dim * 2                 # x block (double-buffered bf16)
    total += 2 * m * embed_dim * 4                 # o block (double-buffered f32)
    total += 2 * 3 * embed_dim * embed_dim * 2     # resident fused qkv weights
    total += 2 * embed_dim * embed_dim * 2         # resident wo weights
    total += m * n * 2                             # ctx scratch (bf16)
    total += m * 3 * n * 4                         # live f32 qkv projection
    total += 2 * block_b * seq_len * seq_len * 4   # scores + probs (one head)
    total += m * embed_dim * 4                     # output-projection partial
    return total


def _prev_divisor(x: int, d: int) -> int:
    for c in range(d - 1, 0, -1):
        if x % c == 0:
            return c
    return 1


def stl_attention_forward(hidden_states, w_q, w_k, w_v, w_o, *, num_heads: int,
                          block_b=None, block_h=None):
    """Pallas equivalent of STLAttention.forward (self-attention path).

    hidden_states: (B, T, E) float32
    w_q, w_k, w_v, w_o: (E, E) float32 in PyTorch nn.Linear (out, in) layout.
    Returns attn_output of shape (B, T, E) float32. The module's attn_weights /
    past_key_value outputs are None in the default configuration.
    """
    B, T, E = hidden_states.shape
    head_dim = E // num_heads
    assert head_dim * num_heads == E
    scaling = head_dim ** (-0.5)

    if block_b is None:
        block_b = _pick_block_b(B, T)
    if block_h is None:
        block_h = _pick_block_h(num_heads, head_dim)
    assert B % block_b == 0 and num_heads % block_h == 0

    # Shrink tiles if the estimated footprint exceeds a conservative budget
    # (keeps headroom under v7x's 64 MiB VMEM).
    budget = 48 * 1024 * 1024
    while _vmem_bytes(block_b, T, E, block_h, head_dim) > budget:
        if block_b > 1:
            block_b = _prev_divisor(B, block_b)
        elif block_h > 1:
            block_h = _prev_divisor(num_heads, block_h)
        else:
            break

    # ---- Host-side weight prep (done once, outside the kernel) ----
    # Fused QKV slab (3*E, E) bf16, rows grouped per head as [q|k|v] blocks of
    # Dh rows; the softmax scaling is folded into the q rows.
    wq_h = (w_q * scaling).reshape(num_heads, head_dim, E)
    wk_h = w_k.reshape(num_heads, head_dim, E)
    wv_h = w_v.reshape(num_heads, head_dim, E)
    w_qkv = jnp.concatenate([wq_h, wk_h, wv_h], axis=1)   # (H, 3*Dh, E)
    w_qkv = w_qkv.reshape(3 * E, E).astype(jnp.bfloat16)
    # Output projection as (E_in, E_out): row h*Dh+d multiplies ctx column
    # (h, d); rows are naturally grouped per head.
    w_out = w_o.T.astype(jnp.bfloat16)                     # (E, E)

    x_bf16 = hidden_states.astype(jnp.bfloat16)            # halves input DMA bytes

    kernel = functools.partial(
        _attention_kernel, block_b=block_b, block_h=block_h, seq_len=T,
        embed_dim=E, head_dim=head_dim)

    x_spec = pl.BlockSpec((block_b, T, E), lambda b, h: (b, 0, 0))
    # Constant index_map + full-array block => weights DMA'd once, resident.
    wqkv_spec = pl.BlockSpec((3 * E, E), lambda b, h: (0, 0))
    wo_spec = pl.BlockSpec((E, E), lambda b, h: (0, 0))
    o_spec = pl.BlockSpec((block_b, T, E), lambda b, h: (b, 0, 0))

    vmem_limit = int(min(64 * 1024 * 1024,
                         max(32 * 1024 * 1024,
                             2 * _vmem_bytes(block_b, T, E, block_h, head_dim))))

    cost = pl.CostEstimate(
        flops=int(8 * B * T * E * E + 4 * B * num_heads * T * T * head_dim),
        transcendentals=int(B * num_heads * T * T),
        bytes_accessed=int(B * T * E * 2 + B * T * E * 4 + 4 * E * E * 2))

    return pl.pallas_call(
        kernel,
        out_shape=jax.ShapeDtypeStruct((B, T, E), jnp.float32),
        grid_spec=pltpu.PrefetchScalarGridSpec(
            num_scalar_prefetch=0,
            grid=(B // block_b, num_heads // block_h),
            in_specs=[x_spec, wqkv_spec, wo_spec],
            out_specs=o_spec,
            scratch_shapes=[
                pltpu.VMEM((block_b * T, block_h * head_dim), jnp.bfloat16)]),
        compiler_params=pltpu.CompilerParams(
            dimension_semantics=("parallel", "arbitrary"),
            vmem_limit_bytes=vmem_limit),
        cost_estimate=cost,
    )(x_bf16, w_qkv, w_out)


def _reference_forward(x, w_q, w_k, w_v, w_o, *, num_heads: int):
    """Pure-JAX f32 reference mirroring the PyTorch forward exactly."""
    B, T, E = x.shape
    Dh = E // num_heads
    scaling = Dh ** (-0.5)

    def shape(t):  # (B, T, E) -> (B*H, T, Dh)
        return (t.reshape(B, T, num_heads, Dh)
                 .transpose(0, 2, 1, 3)
                 .reshape(B * num_heads, T, Dh))

    q = shape(jnp.einsum('bte,oe->bto', x, w_q) * scaling)
    k = shape(jnp.einsum('bte,oe->bto', x, w_k))
    v = shape(jnp.einsum('bte,oe->bto', x, w_v))

    attn_w = jnp.einsum('btd,bsd->bts', q, k)
    attn_w = jax.nn.softmax(attn_w, axis=-1)
    out = jnp.einsum('bts,bsd->btd', attn_w, v)
    out = (out.reshape(B, num_heads, T, Dh)
              .transpose(0, 2, 1, 3)
              .reshape(B, T, E))
    return jnp.einsum('bte,oe->bto', out, w_o)


if __name__ == "__main__":
    # Small shapes consistent with the module: batch=2, seq=8, embed_dim=32,
    # num_heads=4 -> head_dim=8.
    B, T, E, H = 2, 8, 32, 4

    key = jax.random.PRNGKey(0)
    kx, kq, kk, kv, ko = jax.random.split(key, 5)

    hidden_states = jax.random.normal(kx, (B, T, E), dtype=jnp.float32)

    # nn.Linear(E, E, bias=False) weights in (out, in) layout.
    init_scale = 1.0 / np.sqrt(E)
    w_q = jax.random.uniform(kq, (E, E), jnp.float32, -init_scale, init_scale)
    w_k = jax.random.uniform(kk, (E, E), jnp.float32, -init_scale, init_scale)
    w_v = jax.random.uniform(kv, (E, E), jnp.float32, -init_scale, init_scale)
    w_o = jax.random.uniform(ko, (E, E), jnp.float32, -init_scale, init_scale)

    out = stl_attention_forward(hidden_states, w_q, w_k, w_v, w_o, num_heads=H)
    out = jax.block_until_ready(out)

    ref = _reference_forward(hidden_states, w_q, w_k, w_v, w_o, num_heads=H)
    # Tolerance reflects bf16 MXU inputs (softmax is f32 with a Newton-refined
    # reciprocal, so normalization error is negligible).
    np.testing.assert_allclose(np.asarray(out), np.asarray(ref),
                               rtol=2e-2, atol=2e-2)

    print("KERNEL_OK")
</pallas_src>

<mosaic_0001>
module attributes {stable_mosaic.version = 11 : i64} {
  func.func @_attention_kernel(%arg0: i32, %arg1: i32, %arg2: memref<1x8x32xbf16, #tpu.memory_space<vmem>>, %arg3: memref<96x32xbf16, #tpu.memory_space<vmem>>, %arg4: memref<32x32xbf16, #tpu.memory_space<vmem>>, %arg5: memref<1x8x32xf32, #tpu.memory_space<vmem>>, %arg6: memref<8x32xbf16, #tpu.memory_space<vmem>>) attributes {dimension_semantics = [#tpu.dimension_semantics<parallel>, #tpu.dimension_semantics<arbitrary>], iteration_bounds = array<i64: 2, 1>, scalar_prefetch = 0 : i64, scratch_operands = 1 : i64, tpu.core_type = #tpu.core_type<tc>, window_params = [{transform_indices = @transform_0, window_bounds = array<i64: 1, 8, 32>}, {pipeline_mode = #tpu.pipeline_mode<synchronous>, transform_indices = @transform_1, window_bounds = array<i64: 96, 32>}, {pipeline_mode = #tpu.pipeline_mode<synchronous>, transform_indices = @transform_2, window_bounds = array<i64: 32, 32>}, {transform_indices = @transform_3, window_bounds = array<i64: 1, 8, 32>}]} {
    %c0_i32 = arith.constant 0 : i32
    %0 = arith.cmpi eq, %arg1, %c0_i32 : i32
    %1 = arith.extui %0 : i1 to i32
    %c0_i32_0 = arith.constant 0 : i32
    %2 = arith.cmpi ne, %1, %c0_i32_0 : i32
    scf.if %2 {
      %cst_39 = arith.constant 0.000000e+00 : f32
      %136 = vector.broadcast %cst_39 : f32 to vector<1x8x32xf32>
      %c0_40 = arith.constant 0 : index
      %c0_41 = arith.constant 0 : index
      %c0_42 = arith.constant 0 : index
      %137 = vector.load %arg5[%c0_40, %c0_41, %c0_42] : memref<1x8x32xf32, #tpu.memory_space<vmem>>, vector<1x8x32xf32>
      tpu.vector_store %arg5[%c0_40, %c0_41, %c0_42], %136 {strides = array<i32>} : memref<1x8x32xf32, #tpu.memory_space<vmem>>, vector<1x8x32xf32>,
    } else {
    }
    %c0 = arith.constant 0 : index
    %c0_1 = arith.constant 0 : index
    %c0_2 = arith.constant 0 : index
    %3 = vector.load %arg2[%c0, %c0_1, %c0_2] : memref<1x8x32xbf16, #tpu.memory_space<vmem>>, vector<1x8x32xbf16>
    %4 = vector.shape_cast %3 : vector<1x8x32xbf16> to vector<8x32xbf16>
    %c96_i32 = arith.constant 96 : i32
    %5 = arith.muli %arg1, %c96_i32 : i32
    %6 = tpu.assume_multiple %5, 96 : i32
    %7 = arith.index_cast %6 : i32 to index
    %c0_3 = arith.constant 0 : index
    %8 = vector.load %arg3[%7, %c0_3] : memref<96x32xbf16, #tpu.memory_space<vmem>>, vector<96x32xbf16>
    %c32_i32 = arith.constant 32 : i32
    %9 = arith.muli %arg1, %c32_i32 : i32
    %10 = tpu.assume_multiple %9, 32 : i32
    %11 = arith.index_cast %10 : i32 to index
    %c0_4 = arith.constant 0 : index
    %12 = vector.load %arg4[%11, %c0_4] : memref<32x32xbf16, #tpu.memory_space<vmem>>, vector<32x32xbf16>
    %cst = arith.constant dense<0.000000e+00> : vector<8x96xf32>
    %13 = tpu.matmul %4, %8, %cst {dimension_numbers = #tpu.dot_dimension_numbers<[1], [1], [0], [0], [0, 0, 1, 0], [], []>} : vector<8x32xbf16>, vector<96x32xbf16>, vector<8x96xf32> -> vector<8x96xf32>
    %14 = vector.extract_strided_slice %13 {offsets = [0, 0], sizes = [8, 8], strides = [1, 1]} : vector<8x96xf32> to vector<8x8xf32>
    %15 = vector.extract_strided_slice %13 {offsets = [0, 8], sizes = [8, 8], strides = [1, 1]} : vector<8x96xf32> to vector<8x8xf32>
    %16 = vector.extract_strided_slice %13 {offsets = [0, 16], sizes = [8, 8], strides = [1, 1]} : vector<8x96xf32> to vector<8x8xf32>
    %17 = vector.shape_cast %14 : vector<8x8xf32> to vector<1x8x8xf32>
    %18 = arith.truncf %17 : vector<1x8x8xf32> to vector<1x8x8xbf16>
    %19 = vector.shape_cast %15 : vector<8x8xf32> to vector<1x8x8xf32>
    %20 = arith.truncf %19 : vector<1x8x8xf32> to vector<1x8x8xbf16>
    %21 = vector.shape_cast %16 : vector<8x8xf32> to vector<1x8x8xf32>
    %22 = arith.truncf %21 : vector<1x8x8xf32> to vector<1x8x8xbf16>
    "tpu.trace_start"() <{level = 10 : i32, message = "btd,bsd->bts"}> : () -> ()
    %cst_5 = arith.constant dense<0.000000e+00> : vector<1x8x8xf32>
    %23 = tpu.matmul %18, %20, %cst_5 {dimension_numbers = #tpu.dot_dimension_numbers<[2], [2], [1], [1], [0, 0, 0, 1, 1, 1], [0], [0]>} : vector<1x8x8xbf16>, vector<1x8x8xbf16>, vector<1x8x8xf32> -> vector<1x8x8xf32>
    "tpu.trace_stop"() : () -> ()
    %cst_6 = arith.constant dense<0xFF800000> : vector<1x8xf32>
    %24 = vector.multi_reduction <maximumf>, %23, %cst_6 [2] : vector<1x8x8xf32> to vector<1x8xf32>
    %25 = vector.shape_cast %24 : vector<1x8xf32> to vector<1x8x1xf32>
    %26 = vector.broadcast %25 : vector<1x8x1xf32> to vector<1x8x8xf32>
    %27 = arith.subf %23, %26 : vector<1x8x8xf32>
    %28 = math.exp %27 : vector<1x8x8xf32>
    %cst_7 = arith.constant dense<0.000000e+00> : vector<1x8xf32>
    %29 = vector.multi_reduction <add>, %28, %cst_7 [2] : vector<1x8x8xf32> to vector<1x8xf32>
    %30 = vector.shape_cast %29 : vector<1x8xf32> to vector<1x8x1xf32>
    %31 = tpu.reciprocal %30 {approx = true} : vector<1x8x1xf32> -> vector<1x8x1xf32>
    %32 = arith.mulf %30, %31 : vector<1x8x1xf32>
    %cst_8 = arith.constant 2.000000e+00 : f32
    %33 = vector.broadcast %cst_8 : f32 to vector<1x8x1xf32>
    %34 = arith.subf %33, %32 : vector<1x8x1xf32>
    %35 = arith.mulf %31, %34 : vector<1x8x1xf32>
    %36 = vector.broadcast %35 : vector<1x8x1xf32> to vector<1x8x8xf32>
    %37 = arith.mulf %28, %36 : vector<1x8x8xf32>
    %38 = arith.truncf %37 : vector<1x8x8xf32> to vector<1x8x8xbf16>
    "tpu.trace_start"() <{level = 10 : i32, message = "bts,bsd->btd"}> : () -> ()
    %cst_9 = arith.constant dense<0.000000e+00> : vector<1x8x8xf32>
    %39 = tpu.matmul %38, %22, %cst_9 {dimension_numbers = #tpu.dot_dimension_numbers<[2], [1], [1], [2], [0, 0, 0, 1, 1, 2], [0], [0]>} : vector<1x8x8xbf16>, vector<1x8x8xbf16>, vector<1x8x8xf32> -> vector<1x8x8xf32>
    "tpu.trace_stop"() : () -> ()
    %40 = vector.shape_cast %39 : vector<1x8x8xf32> to vector<8x8xf32>
    %41 = arith.truncf %40 : vector<8x8xf32> to vector<8x8xbf16>
    %c0_10 = arith.constant 0 : index
    %c0_11 = arith.constant 0 : index
    %42 = vector.load %arg6[%c0_10, %c0_11] : memref<8x32xbf16, #tpu.memory_space<vmem>>, vector<8x8xbf16>
    tpu.vector_store %arg6[%c0_10, %c0_11], %41 {strides = array<i32>} : memref<8x32xbf16, #tpu.memory_space<vmem>>, vector<8x8xbf16>,
    %43 = vector.extract_strided_slice %13 {offsets = [0, 24], sizes = [8, 8], strides = [1, 1]} : vector<8x96xf32> to vector<8x8xf32>
    %44 = vector.extract_strided_slice %13 {offsets = [0, 32], sizes = [8, 8], strides = [1, 1]} : vector<8x96xf32> to vector<8x8xf32>
    %45 = vector.extract_strided_slice %13 {offsets = [0, 40], sizes = [8, 8], strides = [1, 1]} : vector<8x96xf32> to vector<8x8xf32>
    %46 = vector.shape_cast %43 : vector<8x8xf32> to vector<1x8x8xf32>
    %47 = arith.truncf %46 : vector<1x8x8xf32> to vector<1x8x8xbf16>
    %48 = vector.shape_cast %44 : vector<8x8xf32> to vector<1x8x8xf32>
    %49 = arith.truncf %48 : vector<1x8x8xf32> to vector<1x8x8xbf16>
    %50 = vector.shape_cast %45 : vector<8x8xf32> to vector<1x8x8xf32>
    %51 = arith.truncf %50 : vector<1x8x8xf32> to vector<1x8x8xbf16>
    "tpu.trace_start"() <{level = 10 : i32, message = "btd,bsd->bts"}> : () -> ()
    %cst_12 = arith.constant dense<0.000000e+00> : vector<1x8x8xf32>
    %52 = tpu.matmul %47, %49, %cst_12 {dimension_numbers = #tpu.dot_dimension_numbers<[2], [2], [1], [1], [0, 0, 0, 1, 1, 1], [0], [0]>} : vector<1x8x8xbf16>, vector<1x8x8xbf16>, vector<1x8x8xf32> -> vector<1x8x8xf32>
    "tpu.trace_stop"() : () -> ()
    %cst_13 = arith.constant dense<0xFF800000> : vector<1x8xf32>
    %53 = vector.multi_reduction <maximumf>, %52, %cst_13 [2] : vector<1x8x8xf32> to vector<1x8xf32>
    %54 = vector.shape_cast %53 : vector<1x8xf32> to vector<1x8x1xf32>
    %55 = vector.broadcast %54 : vector<1x8x1xf32> to vector<1x8x8xf32>
    %56 = arith.subf %52, %55 : vector<1x8x8xf32>
    %57 = math.exp %56 : vector<1x8x8xf32>
    %cst_14 = arith.constant dense<0.000000e+00> : vector<1x8xf32>
    %58 = vector.multi_reduction <add>, %57, %cst_14 [2] : vector<1x8x8xf32> to vector<1x8xf32>
    %59 = vector.shape_cast %58 : vector<1x8xf32> to vector<1x8x1xf32>
    %60 = tpu.reciprocal %59 {approx = true} : vector<1x8x1xf32> -> vector<1x8x1xf32>
    %61 = arith.mulf %59, %60 : vector<1x8x1xf32>
    %cst_15 = arith.constant 2.000000e+00 : f32
    %62 = vector.broadcast %cst_15 : f32 to vector<1x8x1xf32>
    %63 = arith.subf %62, %61 : vector<1x8x1xf32>
    %64 = arith.mulf %60, %63 : vector<1x8x1xf32>
    %65 = vector.broadcast %64 : vector<1x8x1xf32> to vector<1x8x8xf32>
    %66 = arith.mulf %57, %65 : vector<1x8x8xf32>
    %67 = arith.truncf %66 : vector<1x8x8xf32> to vector<1x8x8xbf16>
    "tpu.trace_start"() <{level = 10 : i32, message = "bts,bsd->btd"}> : () -> ()
    %cst_16 = arith.constant dense<0.000000e+00> : vector<1x8x8xf32>
    %68 = tpu.matmul %67, %51, %cst_16 {dimension_numbers = #tpu.dot_dimension_numbers<[2], [1], [1], [2], [0, 0, 0, 1, 1, 2], [0], [0]>} : vector<1x8x8xbf16>, vector<1x8x8xbf16>, vector<1x8x8xf32> -> vector<1x8x8xf32>
    "tpu.trace_stop"() : () -> ()
    %69 = vector.shape_cast %68 : vector<1x8x8xf32> to vector<8x8xf32>
    %70 = arith.truncf %69 : vector<8x8xf32> to vector<8x8xbf16>
    %c0_17 = arith.constant 0 : index
    %c8 = arith.constant 8 : index
    %71 = vector.load %arg6[%c0_17, %c8] : memref<8x32xbf16, #tpu.memory_space<vmem>>, vector<8x8xbf16>
    tpu.vector_store %arg6[%c0_17, %c8], %70 {strides = array<i32>} : memref<8x32xbf16, #tpu.memory_space<vmem>>, vector<8x8xbf16>,
    %72 = vector.extract_strided_slice %13 {offsets = [0, 48], sizes = [8, 8], strides = [1, 1]} : vector<8x96xf32> to vector<8x8xf32>
    %73 = vector.extract_strided_slice %13 {offsets = [0, 56], sizes = [8, 8], strides = [1, 1]} : vector<8x96xf32> to vector<8x8xf32>
    %74 = vector.extract_strided_slice %13 {offsets = [0, 64], sizes = [8, 8], strides = [1, 1]} : vector<8x96xf32> to vector<8x8xf32>
    %75 = vector.shape_cast %72 : vector<8x8xf32> to vector<1x8x8xf32>
    %76 = arith.truncf %75 : vector<1x8x8xf32> to vector<1x8x8xbf16>
    %77 = vector.shape_cast %73 : vector<8x8xf32> to vector<1x8x8xf32>
    %78 = arith.truncf %77 : vector<1x8x8xf32> to vector<1x8x8xbf16>
    %79 = vector.shape_cast %74 : vector<8x8xf32> to vector<1x8x8xf32>
    %80 = arith.truncf %79 : vector<1x8x8xf32> to vector<1x8x8xbf16>
    "tpu.trace_start"() <{level = 10 : i32, message = "btd,bsd->bts"}> : () -> ()
    %cst_18 = arith.constant dense<0.000000e+00> : vector<1x8x8xf32>
    %81 = tpu.matmul %76, %78, %cst_18 {dimension_numbers = #tpu.dot_dimension_numbers<[2], [2], [1], [1], [0, 0, 0, 1, 1, 1], [0], [0]>} : vector<1x8x8xbf16>, vector<1x8x8xbf16>, vector<1x8x8xf32> -> vector<1x8x8xf32>
    "tpu.trace_stop"() : () -> ()
    %cst_19 = arith.constant dense<0xFF800000> : vector<1x8xf32>
    %82 = vector.multi_reduction <maximumf>, %81, %cst_19 [2] : vector<1x8x8xf32> to vector<1x8xf32>
    %83 = vector.shape_cast %82 : vector<1x8xf32> to vector<1x8x1xf32>
    %84 = vector.broadcast %83 : vector<1x8x1xf32> to vector<1x8x8xf32>
    %85 = arith.subf %81, %84 : vector<1x8x8xf32>
    %86 = math.exp %85 : vector<1x8x8xf32>
    %cst_20 = arith.constant dense<0.000000e+00> : vector<1x8xf32>
    %87 = vector.multi_reduction <add>, %86, %cst_20 [2] : vector<1x8x8xf32> to vector<1x8xf32>
    %88 = vector.shape_cast %87 : vector<1x8xf32> to vector<1x8x1xf32>
    %89 = tpu.reciprocal %88 {approx = true} : vector<1x8x1xf32> -> vector<1x8x1xf32>
    %90 = arith.mulf %88, %89 : vector<1x8x1xf32>
    %cst_21 = arith.constant 2.000000e+00 : f32
    %91 = vector.broadcast %cst_21 : f32 to vector<1x8x1xf32>
    %92 = arith.subf %91, %90 : vector<1x8x1xf32>
    %93 = arith.mulf %89, %92 : vector<1x8x1xf32>
    %94 = vector.broadcast %93 : vector<1x8x1xf32> to vector<1x8x8xf32>
    %95 = arith.mulf %86, %94 : vector<1x8x8xf32>
    %96 = arith.truncf %95 : vector<1x8x8xf32> to vector<1x8x8xbf16>
    "tpu.trace_start"() <{level = 10 : i32, message = "bts,bsd->btd"}> : () -> ()
    %cst_22 = arith.constant dense<0.000000e+00> : vector<1x8x8xf32>
    %97 = tpu.matmul %96, %80, %cst_22 {dimension_numbers = #tpu.dot_dimension_numbers<[2], [1], [1], [2], [0, 0, 0, 1, 1, 2], [0], [0]>} : vector<1x8x8xbf16>, vector<1x8x8xbf16>, vector<1x8x8xf32> -> vector<1x8x8xf32>
    "tpu.trace_stop"() : () -> ()
    %98 = vector.shape_cast %97 : vector<1x8x8xf32> to vector<8x8xf32>
    %99 = arith.truncf %98 : vector<8x8xf32> to vector<8x8xbf16>
    %c0_23 = arith.constant 0 : index
    %c16 = arith.constant 16 : index
    %100 = vector.load %arg6[%c0_23, %c16] : memref<8x32xbf16, #tpu.memory_space<vmem>>, vector<8x8xbf16>
    tpu.vector_store %arg6[%c0_23, %c16], %99 {strides = array<i32>} : memref<8x32xbf16, #tpu.memory_space<vmem>>, vector<8x8xbf16>,
    %101 = vector.extract_strided_slice %13 {offsets = [0, 72], sizes = [8, 8], strides = [1, 1]} : vector<8x96xf32> to vector<8x8xf32>
    %102 = vector.extract_strided_slice %13 {offsets = [0, 80], sizes = [8, 8], strides = [1, 1]} : vector<8x96xf32> to vector<8x8xf32>
    %103 = vector.extract_strided_slice %13 {offsets = [0, 88], sizes = [8, 8], strides = [1, 1]} : vector<8x96xf32> to vector<8x8xf32>
    %104 = vector.shape_cast %101 : vector<8x8xf32> to vector<1x8x8xf32>
    %105 = arith.truncf %104 : vector<1x8x8xf32> to vector<1x8x8xbf16>
    %106 = vector.shape_cast %102 : vector<8x8xf32> to vector<1x8x8xf32>
    %107 = arith.truncf %106 : vector<1x8x8xf32> to vector<1x8x8xbf16>
    %108 = vector.shape_cast %103 : vector<8x8xf32> to vector<1x8x8xf32>
    %109 = arith.truncf %108 : vector<1x8x8xf32> to vector<1x8x8xbf16>
    "tpu.trace_start"() <{level = 10 : i32, message = "btd,bsd->bts"}> : () -> ()
    %cst_24 = arith.constant dense<0.000000e+00> : vector<1x8x8xf32>
    %110 = tpu.matmul %105, %107, %cst_24 {dimension_numbers = #tpu.dot_dimension_numbers<[2], [2], [1], [1], [0, 0, 0, 1, 1, 1], [0], [0]>} : vector<1x8x8xbf16>, vector<1x8x8xbf16>, vector<1x8x8xf32> -> vector<1x8x8xf32>
    "tpu.trace_stop"() : () -> ()
    %cst_25 = arith.constant dense<0xFF800000> : vector<1x8xf32>
    %111 = vector.multi_reduction <maximumf>, %110, %cst_25 [2] : vector<1x8x8xf32> to vector<1x8xf32>
    %112 = vector.shape_cast %111 : vector<1x8xf32> to vector<1x8x1xf32>
    %113 = vector.broadcast %112 : vector<1x8x1xf32> to vector<1x8x8xf32>
    %114 = arith.subf %110, %113 : vector<1x8x8xf32>
    %115 = math.exp %114 : vector<1x8x8xf32>
    %cst_26 = arith.constant dense<0.000000e+00> : vector<1x8xf32>
    %116 = vector.multi_reduction <add>, %115, %cst_26 [2] : vector<1x8x8xf32> to vector<1x8xf32>
    %117 = vector.shape_cast %116 : vector<1x8xf32> to vector<1x8x1xf32>
    %118 = tpu.reciprocal %117 {approx = true} : vector<1x8x1xf32> -> vector<1x8x1xf32>
    %119 = arith.mulf %117, %118 : vector<1x8x1xf32>
    %cst_27 = arith.constant 2.000000e+00 : f32
    %120 = vector.broadcast %cst_27 : f32 to vector<1x8x1xf32>
    %121 = arith.subf %120, %119 : vector<1x8x1xf32>
    %122 = arith.mulf %118, %121 : vector<1x8x1xf32>
    %123 = vector.broadcast %122 : vector<1x8x1xf32> to vector<1x8x8xf32>
    %124 = arith.mulf %115, %123 : vector<1x8x8xf32>
    %125 = arith.truncf %124 : vector<1x8x8xf32> to vector<1x8x8xbf16>
    "tpu.trace_start"() <{level = 10 : i32, message = "bts,bsd->btd"}> : () -> ()
    %cst_28 = arith.constant dense<0.000000e+00> : vector<1x8x8xf32>
    %126 = tpu.matmul %125, %109, %cst_28 {dimension_numbers = #tpu.dot_dimension_numbers<[2], [1], [1], [2], [0, 0, 0, 1, 1, 2], [0], [0]>} : vector<1x8x8xbf16>, vector<1x8x8xbf16>, vector<1x8x8xf32> -> vector<1x8x8xf32>
    "tpu.trace_stop"() : () -> ()
    %127 = vector.shape_cast %126 : vector<1x8x8xf32> to vector<8x8xf32>
    %128 = arith.truncf %127 : vector<8x8xf32> to vector<8x8xbf16>
    %c0_29 = arith.constant 0 : index
    %c24 = arith.constant 24 : index
    %129 = vector.load %arg6[%c0_29, %c24] : memref<8x32xbf16, #tpu.memory_space<vmem>>, vector<8x8xbf16>
    tpu.vector_store %arg6[%c0_29, %c24], %128 {strides = array<i32>} : memref<8x32xbf16, #tpu.memory_space<vmem>>, vector<8x8xbf16>,
    %c0_30 = arith.constant 0 : index
    %c0_31 = arith.constant 0 : index
    %130 = vector.load %arg6[%c0_30, %c0_31] : memref<8x32xbf16, #tpu.memory_space<vmem>>, vector<8x32xbf16>
    %cst_32 = arith.constant dense<0.000000e+00> : vector<8x32xf32>
    %131 = tpu.matmul %130, %12, %cst_32 {dimension_numbers = #tpu.dot_dimension_numbers<[1], [0], [0], [1], [0, 0, 1, 1], [], []>} : vector<8x32xbf16>, vector<32x32xbf16>, vector<8x32xf32> -> vector<8x32xf32>
    %c0_33 = arith.constant 0 : index
    %c0_34 = arith.constant 0 : index
    %c0_35 = arith.constant 0 : index
    %132 = vector.load %arg5[%c0_33, %c0_34, %c0_35] : memref<1x8x32xf32, #tpu.memory_space<vmem>>, vector<1x8x32xf32>
    %133 = vector.shape_cast %131 : vector<8x32xf32> to vector<1x8x32xf32>
    %134 = arith.addf %132, %133 : vector<1x8x32xf32>
    %c0_36 = arith.constant 0 : index
    %c0_37 = arith.constant 0 : index
    %c0_38 = arith.constant 0 : index
    %135 = vector.load %arg5[%c0_36, %c0_37, %c0_38] : memref<1x8x32xf32, #tpu.memory_space<vmem>>, vector<1x8x32xf32>
    tpu.vector_store %arg5[%c0_36, %c0_37, %c0_38], %134 {strides = array<i32>} : memref<1x8x32xf32, #tpu.memory_space<vmem>>, vector<1x8x32xf32>,
    return
  }
  func.func @transform_0(%arg0: i32, %arg1: i32) -> (i32, i32, i32) {
    %c0_i32 = arith.constant 0 : i32
    %c0_i32_0 = arith.constant 0 : i32
    %c0_i32_1 = arith.constant 0 : i32
    return %arg0, %c0_i32, %c0_i32_0 : i32, i32, i32
  }
  func.func @transform_1(%arg0: i32, %arg1: i32) -> (i32, i32) {
    %c0_i32 = arith.constant 0 : i32
    %c0_i32_0 = arith.constant 0 : i32
    %c0_i32_1 = arith.constant 0 : i32
    return %c0_i32, %c0_i32_0 : i32, i32
  }
  func.func @transform_2(%arg0: i32, %arg1: i32) -> (i32, i32) {
    %c0_i32 = arith.constant 0 : i32
    %c0_i32_0 = arith.constant 0 : i32
    %c0_i32_1 = arith.constant 0 : i32
    return %c0_i32, %c0_i32_0 : i32, i32
  }
  func.func @transform_3(%arg0: i32, %arg1: i32) -> (i32, i32, i32) {
    %c0_i32 = arith.constant 0 : i32
    %c0_i32_0 = arith.constant 0 : i32
    %c0_i32_1 = arith.constant 0 : i32
    return %arg0, %c0_i32, %c0_i32_0 : i32, i32, i32
  }
}

</mosaic_0001>

<llo_original>
// kernel: tpu_custom_call.1
$region0: #{tpu_custom_call.1}
  #allocation0 [shape = 'u32[]', space=smem, size = 0x4, offset = 0x4, fixed_abs, tag = 'smem constant byte address 0x4 - core index']
  #allocation1 [shape = 'u32[72,128]{1,0:T(1,128)}', space=vmem, size = 0x9000, scoped, tag = 'internal scratch']
  #allocation2 [shape = 'bf16[8,32]{1,0:T(8,128)(2,1)}', space=vmem, size = 0x800, scoped, tag = 'scratch operand']
  %s0 = inlined_call_operand.vmem [shape: bf16[2,8,32], index: 0, kind: input, shape index: {}]
  %s1 = inlined_call_operand.vmem [shape: bf16[96,32], index: 1, kind: input, shape index: {}]
  %s2 = inlined_call_operand.vmem [shape: bf16[32,32], index: 2, kind: input, shape index: {}]
  %s3 = inlined_call_operand.hbm [shape: f32[2,8,32], index: 3, kind: output, shape index: {}]
  %s4 = sld [smem:[#allocation0]]
  $region49: #{tpu_custom_call.1} parent=0
    _
  %s6 = ssub.s32 1, %s4
  %s7 = scalar_select 0, %s6, %s4
  $region1: #{tpu_custom_call.1} parent=0
    #allocation3 [shape = 'u8[8192]{0}', space=vmem, size = 0x2000, scoped, tag = 'output window, operand 0']
    #allocation4 [shape = 's32[2]{0}', space=sflag, size = 0x8, scoped, tag = 'scoped memory for tpu_custom_call.1']
    %8 = vsyncpa [#allocation4], 0
    %s9 = scalar_lea.sflag [#allocation4], 1
    %10 = vsyncpa %s9, 0
    loop: start=0, step=1, limit=4
    $region2: #{tpu_custom_call.1} parent=1 // loop_pre_header
      _
    $region3: #{tpu_custom_call.1} parent=1 // loop_header
      %s12 = sphi 0, %s16
      %p13 = scmp.ge.s32.totalorder %s12, 4
      %s19 = sphi 0, %s31
      %s20 = sphi 0, %s27
      %s21 = sphi 0, %s19
      %s22 = sphi 0, %s20
      %s23 = sphi 0, %s21
      %s24 = sphi 0, %s22
      %s34 = sphi 0, %s36
      %s37 = sphi 0, %s34
      %s38 = sphi 0, %s37
      %s54 = sphi 0, %s38
      %s58 = sphi 0, %s58
      %s60 = sphi 0, %s58
      %s61 = sphi 0, %s60
      %s75 = sphi 0, %s61
      %s79 = sphi 0, %s79
      %s81 = sphi 0, %s79
      %s82 = sphi 0, %s81
      %s96 = sphi 0, %s82
      %s102 = sphi 0, %s104
      %s105 = sphi 0, %s102
      %s106 = sphi 0, %s105
      %s122 = sphi 0, %s106
    $region4: #{tpu_custom_call.1} parent=1 // loop_header_branch
      %15 = sbr.rel (%p13) target = $region8
    $region5: #{tpu_custom_call.1} parent=1 // loop_body
      %s17 = ssub.s32 %s12, 1
      %s18 = ssub.s32 %s12, 2
      %s25 = sadd.s32 1, %s20
      %p26 = scmp.ge.s32.totalorder %s25, 1
      %s27 = scalar_select %p26, 0, %s25
      %s28 = sadd.s32 1, %s19
      %s29 = scalar_select %p26, %s28, %s19
      %p30 = scmp.ge.s32.totalorder %s29, 2
      %s31 = scalar_select %p30, 0, %s29
      %s32 = ssub.s32 %s19, %s31
      %p33 = scmp.eq.s32.totalorder %s32, 0
      %s35 = sadd.s32 %s34, 1
      %s36 = scalar_select %p33, %s34, %s35
      %p39 = pneg %p33
      %p40 = scmp.eq.s32.totalorder %s12, 1
      %p41 = por %p39, %p40
      %p42 = scmp.ne.s32.totalorder %s34, %s37
      %p43 = scmp.eq.s32.totalorder %s12, 0
      %p44 = por %p42, %p43
      %p45 = scmp.ne.s32.totalorder %s34, %s37
      %p46 = scmp.eq.s32.totalorder %s17, 1
      %p47 = por %p45, %p46
      %p48 = scmp.ne.s32.totalorder %s37, %s38
      %p49 = scmp.eq.s32.totalorder %s17, 0
      %p50 = por %p48, %p49
      %p51 = scmp.ne.s32.totalorder %s37, %s38
      %p52 = scmp.eq.s32.totalorder %s18, 1
      %p53 = por %p51, %p52
      %p55 = scmp.ne.s32.totalorder %s38, %s54
      %p56 = scmp.eq.s32.totalorder %s18, 0
      %p57 = por %p55, %p56
      %s59 = sadd.s32 %s58, 1
      %p62 = scmp.eq.s32.totalorder %s12, 1
      %p63 = scmp.ne.s32.totalorder %s58, %s60
      %p64 = scmp.eq.s32.totalorder %s12, 0
      %p65 = por %p63, %p64
      %p66 = scmp.ne.s32.totalorder %s58, %s60
      %p67 = scmp.eq.s32.totalorder %s17, 1
      %p68 = por %p66, %p67
      %p69 = scmp.ne.s32.totalorder %s60, %s61
      %p70 = scmp.eq.s32.totalorder %s17, 0
      %p71 = por %p69, %p70
      %p72 = scmp.ne.s32.totalorder %s60, %s61
      %p73 = scmp.eq.s32.totalorder %s18, 1
      %p74 = por %p72, %p73
      %p76 = scmp.ne.s32.totalorder %s61, %s75
      %p77 = scmp.eq.s32.totalorder %s18, 0
      %p78 = por %p76, %p77
      %s80 = sadd.s32 %s79, 1
      %p83 = scmp.eq.s32.totalorder %s12, 1
      %p84 = scmp.ne.s32.totalorder %s79, %s81
      %p85 = scmp.eq.s32.totalorder %s12, 0
      %p86 = por %p84, %p85
      %p87 = scmp.ne.s32.totalorder %s79, %s81
      %p88 = scmp.eq.s32.totalorder %s17, 1
      %p89 = por %p87, %p88
      %p90 = scmp.ne.s32.totalorder %s81, %s82
      %p91 = scmp.eq.s32.totalorder %s17, 0
      %p92 = por %p90, %p91
      %p93 = scmp.ne.s32.totalorder %s81, %s82
      %p94 = scmp.eq.s32.totalorder %s18, 1
      %p95 = por %p93, %p94
      %p97 = scmp.ne.s32.totalorder %s82, %s96
      %p98 = scmp.eq.s32.totalorder %s18, 0
      %p99 = por %p97, %p98
      %s100 = ssub.s32 %s19, %s31
      %p101 = scmp.eq.s32.totalorder %s100, 0
      %s103 = sadd.s32 %s102, 1
      %s104 = scalar_select %p101, %s102, %s103
      %p107 = pneg %p101
      %p108 = scmp.eq.s32.totalorder %s12, 1
      %p109 = por %p107, %p108
      %p110 = scmp.ne.s32.totalorder %s102, %s105
      %p111 = scmp.eq.s32.totalorder %s12, 0
      %p112 = por %p110, %p111
      %p113 = scmp.ne.s32.totalorder %s102, %s105
      %p114 = scmp.eq.s32.totalorder %s17, 1
      %p115 = por %p113, %p114
      %p116 = scmp.ne.s32.totalorder %s105, %s106
      %p117 = scmp.eq.s32.totalorder %s17, 0
      %p118 = por %p116, %p117
      %p119 = scmp.ne.s32.totalorder %s105, %s106
      %p120 = scmp.eq.s32.totalorder %s18, 1
      %p121 = por %p119, %p120
      %p123 = scmp.ne.s32.totalorder %s106, %s122
      %p124 = scmp.eq.s32.totalorder %s18, 0
      %p125 = por %p123, %p124
      %p126 = scmp.le.s32.totalorder 1, %s12
      %p127 = scmp.lt.s32.totalorder %s12, 3
      %p128 = pnand %p126, %p127
      %p129 = pneg %p128
      // Predicated region
      $region9: #{tpu_custom_call.1} parent=5 // pred_check
        _
      $region10: #{tpu_custom_call.1} parent=5 // pred_check_branch
        %131 = sbr.rel (%p128) target = $region12
      $region11: #{tpu_custom_call.1} parent=5 // pred_region
        %s132 = ssub.s32 %s12, 1
        // Predicated region
        $region13: #{tpu_custom_call.1} parent=11 // pred_check
          %p133 = pneg %p71
        $region14: #{tpu_custom_call.1} parent=11 // pred_check_branch
          %135 = sbr.rel (%p133) target = $region16
        $region15: #{tpu_custom_call.1} parent=11 // pred_region
          _
        $region16: #{tpu_custom_call.1} parent=11 // pred_fallthru
          _
        // Predicated region
        $region17: #{tpu_custom_call.1} parent=11 // pred_check
          %p136 = pneg %p92
        $region18: #{tpu_custom_call.1} parent=11 // pred_check_branch
          %138 = sbr.rel (%p136) target = $region20
        $region19: #{tpu_custom_call.1} parent=11 // pred_region
          _
        $region20: #{tpu_custom_call.1} parent=11 // pred_fallthru
          _
      $region12: #{tpu_custom_call.1} parent=5 // pred_fallthru
        _
      %p139 = scmp.lt.s32.totalorder %s12, 2
      // Predicated region
      $region21: #{tpu_custom_call.1} parent=5 // pred_check
        %p140 = pneg %p139
      $region22: #{tpu_custom_call.1} parent=5 // pred_check_branch
        %142 = sbr.rel (%p140) target = $region24
      $region23: #{tpu_custom_call.1} parent=5 // pred_region
        // Predicated region
        $region25: #{tpu_custom_call.1} parent=23 // pred_check
          %p143 = pneg %p44
        $region26: #{tpu_custom_call.1} parent=23 // pred_check_branch
          %145 = sbr.rel (%p143) target = $region28
        $region27: #{tpu_custom_call.1} parent=23 // pred_region
          %p146 = scmp.lt.s32.totalorder %s19, 1
          %s147 = scalar_select %p146, %s19, 1
          %s148 = smul.addr %s147, 4
          %s149 = scalar_lea.vmem %s0, %s148
        $region28: #{tpu_custom_call.1} parent=23 // pred_fallthru
          _
      $region24: #{tpu_custom_call.1} parent=5 // pred_fallthru
        _
      %p150 = scmp.le.s32.totalorder 1, %s12
      %p151 = scmp.lt.s32.totalorder %s12, 3
      %p152 = pnand %p150, %p151
      %p153 = pneg %p152
      // Predicated region
      $region29: #{tpu_custom_call.1} parent=5 // pred_check
        _
      $region30: #{tpu_custom_call.1} parent=5 // pred_check_branch
        %155 = sbr.rel (%p152) target = $region32
      $region31: #{tpu_custom_call.1} parent=5 // pred_region
        %s156 = ssub.s32 %s12, 1
        %p157 = scmp.lt.s32.totalorder %s21, 1
        %s158 = scalar_select %p157, %s21, 1
        %s159 = smul.addr %s158, 4
        %s160 = scalar_lea.vmem %s0, %s159
        %p161 = pneg %p50
        %p162 = pneg %p47
        %p163 = pneg %p71
        %p164 = pneg %p68
        %p165 = pneg %p92
        %p166 = pneg %p89
        %p167 = pneg %p118
        %p168 = pneg %p115
        %s169 = sand.u32 %s105, 1
        %s170 = scalar_lea.sflag [#allocation4], %s169
        %s171 = sand.u32 %s105, 1
        %s172 = smul.addr %s171, 8
        %s173 = scalar_lea.vmem [#allocation3], %s172
        %p174 = scmp.lt.s32.totalorder %s21, 1
        %s175 = scalar_select %p174, %s21, 1
        %s176 = smul.addr %s175, 4
        %s177 = scalar_lea.vmem %s0, %s176
        %p179 = scmp.eq.s32.totalorder %s22, 0
        // Predicated region
        $region33: #{tpu_custom_call.1} parent=31 // pred_check
          %p180 = pneg %p179
        $region34: #{tpu_custom_call.1} parent=31 // pred_check_branch
          %182 = sbr.rel (%p180) target = $region36
        $region35: #{tpu_custom_call.1} parent=31 // pred_region
          %vm183 = vcmask 261120
          %184 = vst.msk [vmem:[%s173] sm:$0xff] %vm183, 0.0
        $region36: #{tpu_custom_call.1} parent=31 // pred_fallthru
          _
        %v185 = vld [vmem:[%s177] sm:$0xf]
        %s186 = smul.u32 %s22, 96
        %s187 = sshra.s32 %s186, 3
        %s188 = sand.u32 %s186, 7
        %s189 = smul.addr %s187, 4
        %s190 = scalar_lea.vmem %s1, %s189
        %v191 = vld [vmem:[%s190] sm:$0xf]
        %v192 = vld [vmem:[%s190 + $0x4] sm:$0xf]
        %v193 = vld [vmem:[%s190 + $0x8] sm:$0xf]
        %v194 = vld [vmem:[%s190 + $0xc] sm:$0xf]
        %v195 = vld [vmem:[%s190 + $0x10] sm:$0xf]
        %v196 = vld [vmem:[%s190 + $0x14] sm:$0xf]
        %v197 = vld [vmem:[%s190 + $0x18] sm:$0xf]
        %v198 = vld [vmem:[%s190 + $0x1c] sm:$0xf]
        %v199 = vld [vmem:[%s190 + $0x20] sm:$0xf]
        %v200 = vld [vmem:[%s190 + $0x24] sm:$0xf]
        %v201 = vld [vmem:[%s190 + $0x28] sm:$0xf]
        %v202 = vld [vmem:[%s190 + $0x2c] sm:$0xf]
        %s203 = smul.u32 %s22, 32
        %s204 = sshra.s32 %s203, 3
        %s205 = sand.u32 %s203, 7
        %s206 = smul.addr %s204, 4
        %s207 = scalar_lea.vmem %s2, %s206
        %v208 = vld [vmem:[%s207] sm:$0xf]
        %v209 = vld [vmem:[%s207 + $0x4] sm:$0xf]
        %v210 = vld [vmem:[%s207 + $0x8] sm:$0xf]
        %v211 = vld [vmem:[%s207 + $0xc] sm:$0xf]
        %v224 = vunpack.c.l.b16 %v191
        %v225 = vunpack.c.l.b16 %v192
        %v226 = vunpack.c.l.b16 %v193
        %v227 = vunpack.c.l.b16 %v194
        %v228 = vunpack.c.l.b16 %v195
        %v229 = vunpack.c.l.b16 %v196
        %v230 = vunpack.c.l.b16 %v197
        %v231 = vunpack.c.l.b16 %v198
        %v232 = vunpack.c.l.b16 %v199
        %v233 = vunpack.c.l.b16 %v200
        %v234 = vunpack.c.l.b16 %v201
        %v235 = vunpack.c.l.b16 %v202
        %v236 = vpack.c.b16 %v225, %v224
        %v237 = vpack.c.b16 %v227, %v226
        %v238 = vpack.c.b16 %v229, %v228
        %v239 = vpack.c.b16 %v231, %v230
        %v240 = vpack.c.b16 %v233, %v232
        %v241 = vpack.c.b16 %v235, %v234
        %vm242 = vcmask 261120
        %v244 = vsel %vm242, %v185, 0
        %v247 = vsel %vm242, %v236, 0
        %v250 = vsel %vm242, %v237, 0
        %v253 = vsel %vm242, %v238, 0
        %v256 = vsel %vm242, %v239, 0
        %v259 = vsel %vm242, %v240, 0
        %v262 = vsel %vm242, %v241, 0
        %264 = vmatpush.bf16.xpose.msra.mxu0 0
        %265 = vmatpush.bf16.xpose.msra.mxu0 0
        %266 = vmatpush.bf16.xpose.msra.mxu0 %v262
        %267 = vmatpush.bf16.xpose.msra.mxu0 %v259
        %268 = vmatpush.bf16.xpose.msra.mxu0 %v256
        %269 = vmatpush.bf16.xpose.msra.mxu0 %v253
        %270 = vmatpush.bf16.xpose.msra.mxu0 %v250
        %271 = vmatpush.bf16.xpose.msra.mxu0 %v247
        %272 = vmatmul.bf16.gmra.mxu0 %v244
        %v273 = vpop.f32.mrf.mxu0
        %v274 = vadd.f32 0.0, %v273
        %v275 = vpop.f32.mrf.mxu0
        %276 = vdwg.mxu0
        %v277 = vpack.c.bf16 %v274, %v274
        %v279 = vunpack.c.l.b16 %v277
        %v280 = vpack.c.b16 %v279, %v279
        %281 = vrot.lane.b32.xlu0 %v280, 120
        %v282 = vpop.permute.xlu0 %281
        %vm283 = vcmask 64512
        %v285 = vsel %vm283, %v277, 0
        %v288 = vsel %vm283, %v282, 0
        %290 = vmatpush.bf16.xpose.msra.mxu0 0
        %291 = vmatpush.bf16.xpose.msra.mxu0 0
        %292 = vmatpush.bf16.xpose.msra.mxu0 0
        %293 = vmatpush.bf16.xpose.msra.mxu0 0
        %294 = vmatpush.bf16.xpose.msra.mxu0 0
        %295 = vmatpush.bf16.xpose.msra.mxu0 0
        %296 = vmatpush.bf16.xpose.msra.mxu0 0
        %297 = vmatpush.bf16.xpose.msra.mxu0 %v288
        %298 = vmatmul.bf16.gmra.mxu0 %v285
        %v299 = vpop.f32.mrf.mxu0
        %v300 = vadd.f32 0.0, %v299
        %v301 = vpop.f32.mrf.mxu0
        %302 = vdwg.mxu0
        %v303 = vsel %vm283, %v300, -inf
        %304 = vmax.xlane.f32.xlu0 %v303
        %v305 = vpop.xlane.xlu0 %304
        %v306 = vsub.f32 %v300, %v305
        %v307 = vmul.f32 %v306, 1.442695
        %v308 = vpow.pop %v307
        %v309 = vsel %vm283, %v308, 0.0
        %310 = vadd.xlane.f32.xlu0 %v309
        %v311 = vpop.xlane.xlu0 %310
        %v312 = vrcp.pop %v311
        %v313 = vmul.f32 %v311, %v312
        %v314 = vsub.f32 2.0, %v313
        %v315 = vmul.f32 %v312, %v314
        %v316 = vmul.f32 %v308, %v315
        %v317 = vpack.c.bf16 %v316, %v316
        %318 = vrot.lane.b32.xlu0 %v280, 112
        %v319 = vpop.permute.xlu0 %318
        %v321 = vsel %vm283, %v317, 0
        %vm323 = vcmask 1043456
        %v325 = vsel %vm323, %v319, 0
        %327 = vmatpush.bf16.msra.mxu0 0
        %328 = vmatpush.bf16.msra.mxu0 0
        %329 = vmatpush.bf16.msra.mxu0 0
        %330 = vmatpush.bf16.msra.mxu0 0
        %331 = vmatpush.bf16.msra.mxu0 0
        %332 = vmatpush.bf16.msra.mxu0 0
        %333 = vmatpush.bf16.msra.mxu0 0
        %334 = vmatpush.bf16.msra.mxu0 %v325
        %335 = vmatmul.bf16.gmra.mxu0 %v321
        %v336 = vpop.f32.mrf.mxu0
        %v337 = vadd.f32 0.0, %v336
        %v338 = vpop.f32.mrf.mxu0
        %339 = vdwg.mxu0
        %v340 = vpack.c.bf16 %v337, %v337
        %vm341 = vcmask 60416
        %342 = vst.msk [vmem:[#allocation2] sm:$0xf] %vm341, %v340
        %343 = vrot.lane.b32.xlu0 %v280, 104
        %v344 = vpop.permute.xlu0 %343
        %345 = vrot.lane.b32.xlu0 %v280, 96
        %v346 = vpop.permute.xlu0 %345
        %v348 = vsel %vm283, %v344, 0
        %v351 = vsel %vm283, %v346, 0
        %353 = vmatpush.bf16.xpose.msra.mxu0 0
        %354 = vmatpush.bf16.xpose.msra.mxu0 0
        %355 = vmatpush.bf16.xpose.msra.mxu0 0
        %356 = vmatpush.bf16.xpose.msra.mxu0 0
        %357 = vmatpush.bf16.xpose.msra.mxu0 0
        %358 = vmatpush.bf16.xpose.msra.mxu0 0
        %359 = vmatpush.bf16.xpose.msra.mxu0 0
        %360 = vmatpush.bf16.xpose.msra.mxu0 %v351
        %361 = vmatmul.bf16.gmra.mxu0 %v348
        %v362 = vpop.f32.mrf.mxu0
        %v363 = vadd.f32 0.0, %v362
        %v364 = vpop.f32.mrf.mxu0
        %365 = vdwg.mxu0
        %v366 = vsel %vm283, %v363, -inf
        %367 = vmax.xlane.f32.xlu0 %v366
        %v368 = vpop.xlane.xlu0 %367
        %v369 = vsub.f32 %v363, %v368
        %v370 = vmul.f32 %v369, 1.442695
        %v371 = vpow.pop %v370
        %v372 = vsel %vm283, %v371, 0.0
        %373 = vadd.xlane.f32.xlu0 %v372
        %v374 = vpop.xlane.xlu0 %373
        %v375 = vrcp.pop %v374
        %v376 = vmul.f32 %v374, %v375
        %v377 = vsub.f32 2.0, %v376
        %v378 = vmul.f32 %v375, %v377
        %v379 = vmul.f32 %v371, %v378
        %v380 = vpack.c.bf16 %v379, %v379
        %381 = vrot.lane.b32.xlu0 %v280, 88
        %v382 = vpop.permute.xlu0 %381
        %v384 = vsel %vm283, %v380, 0
        %v387 = vsel %vm323, %v382, 0
        %389 = vmatpush.bf16.msra.mxu0 0
        %390 = vmatpush.bf16.msra.mxu0 0
        %391 = vmatpush.bf16.msra.mxu0 0
        %392 = vmatpush.bf16.msra.mxu0 0
        %393 = vmatpush.bf16.msra.mxu0 0
        %394 = vmatpush.bf16.msra.mxu0 0
        %395 = vmatpush.bf16.msra.mxu0 0
        %396 = vmatpush.bf16.msra.mxu0 %v387
        %397 = vmatmul.bf16.gmra.mxu0 %v384
        %v398 = vpop.f32.mrf.mxu0
        %v399 = vadd.f32 0.0, %v398
        %v400 = vpop.f32.mrf.mxu0
        %401 = vdwg.mxu0
        %v402 = vpack.c.bf16 %v399, %v399
        %404 = vrot.lane.b32.xlu0 %v402, 8
        %v405 = vpop.permute.xlu0 %404
        %vm407 = vcmask 126016
        %408 = vst.msk [vmem:[#allocation2] sm:$0xf] %vm407, %v405
        %409 = vrot.lane.b32.xlu0 %v280, 80
        %v410 = vpop.permute.xlu0 %409
        %411 = vrot.lane.b32.xlu0 %v280, 72
        %v412 = vpop.permute.xlu0 %411
        %v414 = vsel %vm283, %v410, 0
        %v417 = vsel %vm283, %v412, 0
        %419 = vmatpush.bf16.xpose.msra.mxu0 0
        %420 = vmatpush.bf16.xpose.msra.mxu0 0
        %421 = vmatpush.bf16.xpose.msra.mxu0 0
        %422 = vmatpush.bf16.xpose.msra.mxu0 0
        %423 = vmatpush.bf16.xpose.msra.mxu0 0
        %424 = vmatpush.bf16.xpose.msra.mxu0 0
        %425 = vmatpush.bf16.xpose.msra.mxu0 0
        %426 = vmatpush.bf16.xpose.msra.mxu0 %v417
        %427 = vmatmul.bf16.gmra.mxu0 %v414
        %v428 = vpop.f32.mrf.mxu0
        %v429 = vadd.f32 0.0, %v428
        %v430 = vpop.f32.mrf.mxu0
        %431 = vdwg.mxu0
        %v432 = vsel %vm283, %v429, -inf
        %433 = vmax.xlane.f32.xlu0 %v432
        %v434 = vpop.xlane.xlu0 %433
        %v435 = vsub.f32 %v429, %v434
        %v436 = vmul.f32 %v435, 1.442695
        %v437 = vpow.pop %v436
        %v438 = vsel %vm283, %v437, 0.0
        %439 = vadd.xlane.f32.xlu0 %v438
        %v440 = vpop.xlane.xlu0 %439
        %v441 = vrcp.pop %v440
        %v442 = vmul.f32 %v440, %v441
        %v443 = vsub.f32 2.0, %v442
        %v444 = vmul.f32 %v441, %v443
        %v445 = vmul.f32 %v437, %v444
        %v446 = vpack.c.bf16 %v445, %v445
        %447 = vrot.lane.b32.xlu0 %v280, 64
        %v448 = vpop.permute.xlu0 %447
        %v450 = vsel %vm283, %v446, 0
        %v453 = vsel %vm323, %v448, 0
        %455 = vmatpush.bf16.msra.mxu0 0
        %456 = vmatpush.bf16.msra.mxu0 0
        %457 = vmatpush.bf16.msra.mxu0 0
        %458 = vmatpush.bf16.msra.mxu0 0
        %459 = vmatpush.bf16.msra.mxu0 0
        %460 = vmatpush.bf16.msra.mxu0 0
        %461 = vmatpush.bf16.msra.mxu0 0
        %462 = vmatpush.bf16.msra.mxu0 %v453
        %463 = vmatmul.bf16.gmra.mxu0 %v450
        %v464 = vpop.f32.mrf.mxu0
        %v465 = vadd.f32 0.0, %v464
        %v466 = vpop.f32.mrf.mxu0
        %467 = vdwg.mxu0
        %v468 = vpack.c.bf16 %v465, %v465
        %470 = vrot.lane.b32.xlu0 %v468, 16
        %v471 = vpop.permute.xlu0 %470
        %vm473 = vcmask 191616
        %474 = vst.msk [vmem:[#allocation2] sm:$0xf] %vm473, %v471
        %475 = vrot.lane.b32.xlu0 %v280, 56
        %v476 = vpop.permute.xlu0 %475
        %477 = vrot.lane.b32.xlu0 %v280, 48
        %v478 = vpop.permute.xlu0 %477
        %v480 = vsel %vm283, %v476, 0
        %v483 = vsel %vm283, %v478, 0
        %485 = vmatpush.bf16.xpose.msra.mxu0 0
        %486 = vmatpush.bf16.xpose.msra.mxu0 0
        %487 = vmatpush.bf16.xpose.msra.mxu0 0
        %488 = vmatpush.bf16.xpose.msra.mxu0 0
        %489 = vmatpush.bf16.xpose.msra.mxu0 0
        %490 = vmatpush.bf16.xpose.msra.mxu0 0
        %491 = vmatpush.bf16.xpose.msra.mxu0 0
        %492 = vmatpush.bf16.xpose.msra.mxu0 %v483
        %493 = vmatmul.bf16.gmra.mxu0 %v480
        %v494 = vpop.f32.mrf.mxu0
        %v495 = vadd.f32 0.0, %v494
        %v496 = vpop.f32.mrf.mxu0
        %497 = vdwg.mxu0
        %v498 = vsel %vm283, %v495, -inf
        %499 = vmax.xlane.f32.xlu0 %v498
        %v500 = vpop.xlane.xlu0 %499
        %v501 = vsub.f32 %v495, %v500
        %v502 = vmul.f32 %v501, 1.442695
        %v503 = vpow.pop %v502
        %v504 = vsel %vm283, %v503, 0.0
        %505 = vadd.xlane.f32.xlu0 %v504
        %v506 = vpop.xlane.xlu0 %505
        %v507 = vrcp.pop %v506
        %v508 = vmul.f32 %v506, %v507
        %v509 = vsub.f32 2.0, %v508
        %v510 = vmul.f32 %v507, %v509
        %v511 = vmul.f32 %v503, %v510
        %v512 = vpack.c.bf16 %v511, %v511
        %513 = vrot.lane.b32.xlu0 %v280, 40
        %v514 = vpop.permute.xlu0 %513
        %v516 = vsel %vm283, %v512, 0
        %v519 = vsel %vm323, %v514, 0
        %521 = vmatpush.bf16.msra.mxu0 0
        %522 = vmatpush.bf16.msra.mxu0 0
        %523 = vmatpush.bf16.msra.mxu0 0
        %524 = vmatpush.bf16.msra.mxu0 0
        %525 = vmatpush.bf16.msra.mxu0 0
        %526 = vmatpush.bf16.msra.mxu0 0
        %527 = vmatpush.bf16.msra.mxu0 0
        %528 = vmatpush.bf16.msra.mxu0 %v519
        %529 = vmatmul.bf16.gmra.mxu0 %v516
        %v530 = vpop.f32.mrf.mxu0
        %v531 = vadd.f32 0.0, %v530
        %v532 = vpop.f32.mrf.mxu0
        %533 = vdwg.mxu0
        %v534 = vpack.c.bf16 %v531, %v531
        %536 = vrot.lane.b32.xlu0 %v534, 24
        %v537 = vpop.permute.xlu0 %536
        %vm539 = vcmask 257216
        %540 = vst.msk [vmem:[#allocation2] sm:$0xf] %vm539, %v537
        %v541 = vld [vmem:[#allocation2] sm:$0xf]
        %v546 = vunpack.c.l.b16 %v208
        %v547 = vunpack.c.l.b16 %v209
        %v548 = vunpack.c.l.b16 %v210
        %v549 = vunpack.c.l.b16 %v211
        %v550 = vpack.c.b16 %v547, %v546
        %v551 = vpack.c.b16 %v549, %v548
        %v555 = vsel %vm242, %v541, 0
        %557 = vmatpush.bf16.msra.mxu0 0
        %558 = vmatpush.bf16.msra.mxu0 0
        %559 = vmatpush.bf16.msra.mxu0 0
        %560 = vmatpush.bf16.msra.mxu0 0
        %561 = vmatpush.bf16.msra.mxu0 0
        %562 = vmatpush.bf16.msra.mxu0 0
        %563 = vmatpush.bf16.msra.mxu0 %v551
        %564 = vmatpush.bf16.msra.mxu0 %v550
        %565 = vmatmul.bf16.gmra.mxu0 %v555
        %v566 = vpop.f32.mrf.mxu0
        %v567 = vadd.f32 0.0, %v566
        %v568 = vpop.f32.mrf.mxu0
        %569 = vdwg.mxu0
        %v570 = vld [vmem:[%s173] sm:$0xff]
        %v571 = vadd.f32 %v570, %v567
        %572 = vst.msk [vmem:[%s173] sm:$0xff] %vm242, %v571
        %s573 = sand.u32 %s105, 1
        %s574 = scalar_lea.sflag [#allocation4], %s573
        %s575 = sand.u32 %s105, 1
        %s576 = smul.addr %s575, 8
        %s577 = scalar_lea.vmem [#allocation3], %s576
        // Predicated region
        $region37: #{tpu_custom_call.1} parent=31 // pred_check
          %p578 = pneg %p115
        $region38: #{tpu_custom_call.1} parent=31 // pred_check_branch
          %580 = sbr.rel (%p578) target = $region40
        $region39: #{tpu_custom_call.1} parent=31 // pred_region
          %582 = vsyncadd %s574, 0
          %s583 = smul.addr %s21, 8
          %s584 = scalar_lea.hbm %s3, %s583
          %s586 = sshll.u32 %s577, 4
          %s587 = int_to_ptr.vmem [resolvable:$true] %s586
          %s588 = sshll.u32 %s584, 4
          %s589 = int_to_ptr.hbm [resolvable:$true] %s588
          %591 = dma.vmem_to_hbm [thread:$0]  %s587, 128, %s589, %s574
        $region40: #{tpu_custom_call.1} parent=31 // pred_fallthru
          _
      $region32: #{tpu_custom_call.1} parent=5 // pred_fallthru
        _
      %p592 = scmp.le.s32.totalorder 2, %s12
      // Predicated region
      $region41: #{tpu_custom_call.1} parent=5 // pred_check
        %p593 = pneg %p592
      $region42: #{tpu_custom_call.1} parent=5 // pred_check_branch
        %595 = sbr.rel (%p593) target = $region44
      $region43: #{tpu_custom_call.1} parent=5 // pred_region
        %s596 = ssub.s32 %s12, 2
        // Predicated region
        $region45: #{tpu_custom_call.1} parent=43 // pred_check
          %p597 = pneg %p121
        $region46: #{tpu_custom_call.1} parent=43 // pred_check_branch
          %599 = sbr.rel (%p597) target = $region48
        $region47: #{tpu_custom_call.1} parent=43 // pred_region
          %s600 = sand.u32 %s106, 1
          %s601 = scalar_lea.sflag [#allocation4], %s600
          %s602 = sand.u32 %s106, 1
          %s603 = smul.addr %s602, 8
          %s604 = scalar_lea.vmem [#allocation3], %s603
          %606 = dma.done %s601, 128
        $region48: #{tpu_custom_call.1} parent=43 // pred_fallthru
          _
      $region44: #{tpu_custom_call.1} parent=5 // pred_fallthru
        _
    $region6: #{tpu_custom_call.1} parent=1 // loop_footer
      %s16 = sadd.s32 1, %s12
    $region7: #{tpu_custom_call.1} parent=1 // loop_footer_branch
      %11 = sbr.rel target = $region3
    $region8: #{tpu_custom_call.1} parent=1 // loop_exit
      _
    %607 = vsyncpa [#allocation4], 1
    %s608 = scalar_lea.sflag [#allocation4], 1
    %609 = vsyncpa %s608, 1

</llo_original>
